<compile_context>
chip_gen: v6e
topology: v6e:2x2x1
jax: 0.10.0
libtpu: 0.0.40
codegen_flags: <defaults>
</compile_context>

<pallas_src>
import functools
import math

import jax
import jax.numpy as jnp
from jax.experimental import pallas as pl
from jax.experimental.pallas import tpu as pltpu


def _round_up(x, m):
    return ((x + m - 1) // m) * m


def _pad_k(k):
    """K (reduction) padding / tile policy, shared by build- and call-sites."""
    if k <= 2048:
        k_pad = _round_up(k, 128)
        tk = k_pad
    else:
        k_pad = _round_up(k, 2048)
        tk = 2048
    return k_pad, tk


def _pad_n(n):
    """N (lane) padding / tile policy (lane-dense, multiple of 128)."""
    if n <= 1024:
        n_pad = _round_up(n, 128)
        tn = n_pad
    else:
        n_pad = _round_up(n, 1024)
        tn = 1024
    return n_pad, tn


def _pad_m(m):
    """M padding / tile policy: bigger tiles for large M to feed the MXU."""
    if m <= 128:
        m_pad = _round_up(m, 16)
        tm = m_pad
    elif m <= 1024:
        m_pad = _round_up(m, 128)
        tm = 128
    else:
        m_pad = _round_up(m, 256)
        tm = 256
    return m_pad, tm


# ---------------------------------------------------------------------------
# Fused epilogue: LRN(size=1) (PyTorch defaults) then LeakyReLU(0.2).
# ---------------------------------------------------------------------------
def _epilogue(y, *, do_lrn, do_act, neg_slope, lrn_alpha, lrn_beta, lrn_k):
    if do_lrn:
        # LocalResponseNorm(size=1): y / (k + alpha * y^2)^beta, denom >= k > 0.
        denom = lrn_k + lrn_alpha * (y * y)
        y = y * jnp.exp(-lrn_beta * jnp.log(denom))       # EUP, cheap
    if do_act:
        y = jnp.where(y >= 0, y, neg_slope * y)           # LeakyReLU
    return y


def _matmul_kernel_single_k(a_ref, w_ref, o_ref, *, epi_kwargs):
    # Full-K tile: no accumulator scratch, no zero-init / copy-out round trip.
    y = jnp.dot(a_ref[...], w_ref[...], preferred_element_type=jnp.float32)
    o_ref[...] = _epilogue(y, **epi_kwargs).astype(o_ref.dtype)


def _matmul_kernel_multi_k(a_ref, w_ref, o_ref, acc_ref, *, epi_kwargs):
    kk = pl.program_id(2)

    @pl.when(kk == 0)
    def _():
        acc_ref[...] = jnp.zeros_like(acc_ref)

    acc_ref[...] += jnp.dot(a_ref[...], w_ref[...],
                            preferred_element_type=jnp.float32)

    @pl.when(kk == pl.num_programs(2) - 1)
    def _():
        o_ref[...] = _epilogue(acc_ref[...], **epi_kwargs).astype(o_ref.dtype)


def fused_conv_matmul(a, w_pad, *, k_true, n_true, out_dtype=jnp.bfloat16,
                      do_lrn=False, do_act=False, neg_slope=0.2,
                      lrn_alpha=1e-4, lrn_beta=0.75, lrn_k=1.0):
    """a: (M, k_true) bf16 activations; w_pad: (K_pad, N_pad) bf16 weight."""
    M = a.shape[0]
    K_pad, N_pad = w_pad.shape
    _, tk = _pad_k(k_true)
    assert K_pad % tk == 0
    N_pad_chk, tn = _pad_n(n_true)
    assert N_pad_chk == N_pad and N_pad % tn == 0
    M_pad, tm = _pad_m(M)

    # Previous layer's kernel already emitted bf16; only the raw network input
    # needs a cast.  Merge the M and K pads into ONE jnp.pad.
    if a.dtype != jnp.bfloat16:
        a = a.astype(jnp.bfloat16)
    if (M_pad != M) or (K_pad != k_true):
        a = jnp.pad(a, ((0, M_pad - M), (0, K_pad - k_true)))

    epi_kwargs = dict(do_lrn=bool(do_lrn), do_act=bool(do_act),
                      neg_slope=float(neg_slope), lrn_alpha=float(lrn_alpha),
                      lrn_beta=float(lrn_beta), lrn_k=float(lrn_k))

    out_bytes = jnp.dtype(out_dtype).itemsize
    cost = pl.CostEstimate(
        flops=2 * M_pad * K_pad * N_pad,
        transcendentals=(2 * M_pad * N_pad) if do_lrn else 0,
        bytes_accessed=M_pad * K_pad * 2 + K_pad * N_pad * 2
                       + M_pad * N_pad * out_bytes)

    k_steps = K_pad // tk
    if k_steps == 1:
        # Fast path used by every layer of this network.
        kernel = functools.partial(_matmul_kernel_single_k, epi_kwargs=epi_kwargs)
        grid = (N_pad // tn, M_pad // tm)                 # N outermost
        grid_spec = pltpu.PrefetchScalarGridSpec(
            num_scalar_prefetch=0,
            grid=grid,
            in_specs=[
                pl.BlockSpec((tm, tk), lambda j, i: (i, 0)),
                pl.BlockSpec((tk, tn), lambda j, i: (0, j)),
            ],
            out_specs=pl.BlockSpec((tm, tn), lambda j, i: (i, j)),
        )
        dim_sem = ("parallel", "parallel")
    else:
        kernel = functools.partial(_matmul_kernel_multi_k, epi_kwargs=epi_kwargs)
        grid = (N_pad // tn, M_pad // tm, k_steps)        # reduction axis last
        grid_spec = pltpu.PrefetchScalarGridSpec(
            num_scalar_prefetch=0,
            grid=grid,
            in_specs=[
                pl.BlockSpec((tm, tk), lambda j, i, k: (i, k)),
                pl.BlockSpec((tk, tn), lambda j, i, k: (k, j)),
            ],
            out_specs=pl.BlockSpec((tm, tn), lambda j, i, k: (i, j)),
            scratch_shapes=[pltpu.VMEM((tm, tn), jnp.float32)],
        )
        dim_sem = ("parallel", "parallel", "arbitrary")

    out = pl.pallas_call(
        kernel,
        out_shape=jax.ShapeDtypeStruct((M_pad, N_pad), out_dtype),
        grid_spec=grid_spec,
        compiler_params=pltpu.CompilerParams(
            dimension_semantics=dim_sem,
            vmem_limit_bytes=32 * 1024 * 1024),
        cost_estimate=cost,
    )(a, w_pad)
    return out[:M, :n_true]


# ---------------------------------------------------------------------------
# im2col glue (pure data movement, left to XLA; stays in bf16).
# ---------------------------------------------------------------------------
def im2col(x, ksize, stride, pad):
    B, H, W, C = x.shape
    if pad > 0:
        x = jnp.pad(x, ((0, 0), (pad, pad), (pad, pad), (0, 0)))
    Hp, Wp = H + 2 * pad, W + 2 * pad
    Ho = (Hp - ksize) // stride + 1
    Wo = (Wp - ksize) // stride + 1
    cols = []
    for dh in range(ksize):
        for dw in range(ksize):
            cols.append(x[:, dh:dh + stride * (Ho - 1) + 1:stride,
                             dw:dw + stride * (Wo - 1) + 1:stride, :])
    patches = jnp.stack(cols, axis=3)                  # (B, Ho, Wo, k*k, C)
    return patches.reshape(B * Ho * Wo, ksize * ksize * C), (B, Ho, Wo)


# ---------------------------------------------------------------------------
# Parameter construction (mirrors netD_Generic_2.__init__).
# Conv weights are reshaped to (k*k*cin, cout), padded to (K_pad, N_pad) and
# cast to bf16 ONCE here; the tiny final 1-channel conv keeps an f32 weight
# and is evaluated by XLA.
# ---------------------------------------------------------------------------
def make_conv_layer(key, cin, cout, ksize, stride, pad, *, lrn, act):
    # PyTorch Conv2d default init == U(-1/sqrt(fan_in), 1/sqrt(fan_in)).
    fan_in = cin * ksize * ksize
    bound = 1.0 / math.sqrt(fan_in)
    w = jax.random.uniform(key, (ksize, ksize, cin, cout), jnp.float32,
                           -bound, bound)
    k_true = ksize * ksize * cin
    n_true = cout
    K_pad, _ = _pad_k(k_true)
    N_pad, _ = _pad_n(n_true)
    w2 = w.reshape(k_true, n_true)
    w2 = jnp.pad(w2, ((0, K_pad - k_true),
                      (0, N_pad - n_true))).astype(jnp.bfloat16)
    return dict(kind="pallas", w=w2, k=ksize, stride=stride, pad=pad,
                k_true=k_true, n_true=n_true, lrn=lrn, act=act)


def make_final_layer(key, cin, ksize):
    fan_in = cin * ksize * ksize
    bound = 1.0 / math.sqrt(fan_in)
    w = jax.random.uniform(key, (ksize, ksize, cin, 1), jnp.float32,
                           -bound, bound)
    # (dh, dw, cin) flattening matches im2col ordering.
    return dict(kind="xla_final", w=w.reshape(ksize * ksize * cin, 1),
                k=ksize, stride=1, pad=0)


def build_params(key, *, nc, ndf, height, width, extra_cap=False,
                 normalize=True, norm_type='lrn'):
    assert height == width, 'Image height is not equal to width'
    # TODO(synk): only the normalize=True, norm_type='lrn' configuration is
    # lowered; the SELU branch and batch/instance/layer norms are not implemented.
    assert normalize and norm_type == 'lrn'
    keys = jax.random.split(key, 16)
    ki = iter(range(16))
    layers = []
    # Conv2d(nc, ndf, 4, 2, 1) + LeakyReLU(0.2)  (no norm on the first conv).
    layers.append(make_conv_layer(keys[next(ki)], nc, ndf, 4, 2, 1,
                                  lrn=False, act=True))
    count = 1
    while count < height / 4:
        layers.append(make_conv_layer(keys[next(ki)], count * ndf,
                                      2 * count * ndf, 4, 2, 1,
                                      lrn=True, act=True))
        if extra_cap:
            layers.append(make_conv_layer(keys[next(ki)], 2 * count * ndf,
                                          2 * count * ndf, 3, 1, 1,
                                          lrn=True, act=True))
        count *= 2
    # Final Conv2d(count*ndf, 1, 2, 1, 0), no norm / activation -> XLA dot.
    layers.append(make_final_layer(keys[next(ki)], count * ndf, 2))
    return {"layers": layers}


# ---------------------------------------------------------------------------
# Forward pass (single-device branch of netD_Generic_2.forward).
# ---------------------------------------------------------------------------
def netd_generic2_forward(params, x_nhwc):
    x = x_nhwc.astype(jnp.bfloat16)            # bf16 activations end to end
    for layer in params["layers"]:
        if layer["kind"] == "pallas":
            a, (B, Ho, Wo) = im2col(x, layer["k"], layer["stride"], layer["pad"])
            y = fused_conv_matmul(a, layer["w"],
                                  k_true=layer["k_true"], n_true=layer["n_true"],
                                  out_dtype=jnp.bfloat16,
                                  do_lrn=layer["lrn"], do_act=layer["act"])
            x = y.reshape(B, Ho, Wo, layer["n_true"])
        else:
            # Final Conv2d(count*ndf, 1, 2, 1, 0): M=B, N=1 -> plain XLA dot
            # (a Pallas launch would waste 127/128 MXU columns here).
            a, (B, Ho, Wo) = im2col(x, layer["k"], layer["stride"], layer["pad"])
            y = jnp.dot(a.astype(jnp.float32), layer["w"])    # f32 output
            x = y.reshape(B, Ho, Wo, 1)
    return x.reshape(-1)          # (B, 1, 1, 1) -> (B,), matches output.view(-1)


if __name__ == "__main__":
    # Small config: resolution 16x16, nc=3, ndf=64 -> convs 3->64->128->256->1.
    B, NC, H, W, NDF = 2, 3, 16, 16, 64

    key = jax.random.PRNGKey(0)
    kx, kp = jax.random.split(key)
    x_nchw = jax.random.normal(kx, (B, NC, H, W), jnp.float32)   # PyTorch NCHW input
    x_nhwc = jnp.transpose(x_nchw, (0, 2, 3, 1))                 # NHWC internally

    params = build_params(kp, nc=NC, ndf=NDF, height=H, width=W,
                          extra_cap=False, normalize=True, norm_type='lrn')

    out = netd_generic2_forward(params, x_nhwc)
    out = jax.block_until_ready(out)
    assert out.shape == (B,), out.shape
    assert bool(jnp.all(jnp.isfinite(out)))
    print("KERNEL_OK")
</pallas_src>

<mosaic_0001>
module attributes {stable_mosaic.version = 11 : i64} {
  func.func @_matmul_kernel_single_k(%arg0: i32, %arg1: i32, %arg2: memref<128x128xbf16, #tpu.memory_space<vmem>>, %arg3: memref<128x128xbf16, #tpu.memory_space<vmem>>, %arg4: memref<128x128xbf16, #tpu.memory_space<vmem>>) attributes {dimension_semantics = [#tpu.dimension_semantics<parallel>, #tpu.dimension_semantics<parallel>], iteration_bounds = array<i64: 1, 1>, scalar_prefetch = 0 : i64, scratch_operands = 0 : i64, tpu.core_type = #tpu.core_type<tc>, window_params = [{transform_indices = @transform_0, window_bounds = array<i64: 128, 128>}, {transform_indices = @transform_1, window_bounds = array<i64: 128, 128>}, {transform_indices = @transform_2, window_bounds = array<i64: 128, 128>}]} {
    %c0 = arith.constant 0 : index
    %c0_0 = arith.constant 0 : index
    %0 = vector.load %arg2[%c0, %c0_0] : memref<128x128xbf16, #tpu.memory_space<vmem>>, vector<128x128xbf16>
    %c0_1 = arith.constant 0 : index
    %c0_2 = arith.constant 0 : index
    %1 = vector.load %arg3[%c0_1, %c0_2] : memref<128x128xbf16, #tpu.memory_space<vmem>>, vector<128x128xbf16>
    %cst = arith.constant dense<0.000000e+00> : vector<128x128xf32>
    %2 = tpu.matmul %0, %1, %cst {dimension_numbers = #tpu.dot_dimension_numbers<[1], [0], [0], [1], [0, 0, 1, 1], [], []>} : vector<128x128xbf16>, vector<128x128xbf16>, vector<128x128xf32> -> vector<128x128xf32>
    %cst_3 = arith.constant 0.000000e+00 : f32
    %3 = vector.broadcast %cst_3 : f32 to vector<128x128xf32>
    %4 = arith.cmpf oge, %2, %3 : vector<128x128xf32>
    %cst_4 = arith.constant 2.000000e-01 : f32
    %5 = vector.broadcast %cst_4 : f32 to vector<128x128xf32>
    %6 = arith.mulf %5, %2 : vector<128x128xf32>
    %7 = arith.select %4, %2, %6 : vector<128x128xi1>, vector<128x128xf32>
    %8 = arith.truncf %7 : vector<128x128xf32> to vector<128x128xbf16>
    %c0_5 = arith.constant 0 : index
    %c0_6 = arith.constant 0 : index
    %9 = vector.load %arg4[%c0_5, %c0_6] : memref<128x128xbf16, #tpu.memory_space<vmem>>, vector<128x128xbf16>
    tpu.vector_store %arg4[%c0_5, %c0_6], %8 {strides = array<i32>} : memref<128x128xbf16, #tpu.memory_space<vmem>>, vector<128x128xbf16>,
    return
  }
  func.func @transform_0(%arg0: i32, %arg1: i32) -> (i32, i32) {
    %c0_i32 = arith.constant 0 : i32
    %c0_i32_0 = arith.constant 0 : i32
    return %arg1, %c0_i32 : i32, i32
  }
  func.func @transform_1(%arg0: i32, %arg1: i32) -> (i32, i32) {
    %c0_i32 = arith.constant 0 : i32
    %c0_i32_0 = arith.constant 0 : i32
    return %c0_i32, %arg0 : i32, i32
  }
  func.func @transform_2(%arg0: i32, %arg1: i32) -> (i32, i32) {
    %c0_i32 = arith.constant 0 : i32
    return %arg1, %arg0 : i32, i32
  }
}

</mosaic_0001>

<llo_original>
// kernel: tpu_custom_call.1
$region0: #{tpu_custom_call.1}
  #allocation0 [shape = 'u32[]', space=smem, size = 0x4, offset = 0x4, fixed_abs, tag = 'smem constant byte address 0x4 - core index']
  #allocation1 [shape = 'u32[144,128]{1,0:T(1,128)}', space=vmem, size = 0x12000, scoped, tag = 'internal scratch']
  %s0 = inlined_call_operand.hbm [shape: bf16[128,128], index: 0, kind: input, shape index: {}]
  %s1 = inlined_call_operand.hbm [shape: bf16[128,128], index: 1, kind: input, shape index: {}]
  %s2 = inlined_call_operand.hbm [shape: bf16[128,128], index: 2, kind: output, shape index: {}]
  %s3 = sld [smem:[#allocation0]]
  $region26: #{tpu_custom_call.1} parent=0
    _
  %s5 = ssub.s32 1, %s3
  %s6 = scalar_select 0, %s5, %s3
  $region1: #{tpu_custom_call.1} parent=0
    #allocation2 [shape = 'u8[32768]{0}', space=vmem, size = 0x8000, scoped, tag = 'input window, operand 0, single buffered']
    #allocation3 [shape = 's32[1]{0}', space=sflag, size = 0x4, scoped, tag = 'scoped memory for tpu_custom_call.1']
    #allocation4 [shape = 's32[1]{0}', space=sflag, size = 0x4, scoped, tag = 'scoped memory for tpu_custom_call.1']
    #allocation5 [shape = 'u8[32768]{0}', space=vmem, size = 0x8000, scoped, tag = 'input window, operand 1, single buffered']
    #allocation6 [shape = 's32[1]{0}', space=sflag, size = 0x4, scoped, tag = 'scoped memory for tpu_custom_call.1']
    #allocation7 [shape = 'u8[32768]{0}', space=vmem, size = 0x8000, scoped, tag = 'output window, operand 0, single buffered']
    %7 = vsyncpa [#allocation3], 0
    %8 = vsyncpa [#allocation6], 0
    %9 = vsyncpa [#allocation4], 0
    // Predicated region
    $region2: #{tpu_custom_call.1} parent=1 // pred_check
      _
    $region3: #{tpu_custom_call.1} parent=1 // pred_check_branch
      %11 = sbr.rel (0) target = $region5
    $region4: #{tpu_custom_call.1} parent=1 // pred_region
      %s13 = ssub.s32 1024, 1024
      %14 = vsyncadd [#allocation3], %s13
      %s15 = sshll.u32 [#allocation2], 4
      %s16 = int_to_ptr.vmem [resolvable:$true] %s15
      %21 = dma.hbm_to_vmem [thread:$0]  %s0, 1024, %s16, [#allocation3], 64, 64, 4
    $region5: #{tpu_custom_call.1} parent=1 // pred_fallthru
      _
    // Predicated region
    $region6: #{tpu_custom_call.1} parent=1 // pred_check
      _
    $region7: #{tpu_custom_call.1} parent=1 // pred_check_branch
      %23 = sbr.rel (0) target = $region9
    $region8: #{tpu_custom_call.1} parent=1 // pred_region
      %s25 = ssub.s32 1024, 1024
      %26 = vsyncadd [#allocation6], %s25
      %s27 = sshll.u32 [#allocation5], 4
      %s28 = int_to_ptr.vmem [resolvable:$true] %s27
      %33 = dma.hbm_to_vmem [thread:$0]  %s1, 1024, %s28, [#allocation6], 64, 64, 4
    $region9: #{tpu_custom_call.1} parent=1 // pred_fallthru
      _
    // Predicated region
    $region10: #{tpu_custom_call.1} parent=1 // pred_check
      _
    $region11: #{tpu_custom_call.1} parent=1 // pred_check_branch
      %35 = sbr.rel (0) target = $region13
    $region12: #{tpu_custom_call.1} parent=1 // pred_region
      %36 = dma.done [#allocation3], 1024
    $region13: #{tpu_custom_call.1} parent=1 // pred_fallthru
      _
    // Predicated region
    $region14: #{tpu_custom_call.1} parent=1 // pred_check
      _
    $region15: #{tpu_custom_call.1} parent=1 // pred_check_branch
      %38 = sbr.rel (0) target = $region17
    $region16: #{tpu_custom_call.1} parent=1 // pred_region
      %39 = dma.done [#allocation6], 1024
    $region17: #{tpu_custom_call.1} parent=1 // pred_fallthru
      _
    %v41 = vld [vmem:[#allocation2] sm:$0xf]
    %v42 = vld [vmem:[#allocation2 + $0x4] sm:$0xf]
    %v43 = vld [vmem:[#allocation2 + $0x8] sm:$0xf]
    %v44 = vld [vmem:[#allocation2 + $0xc] sm:$0xf]
    %v45 = vld [vmem:[#allocation2 + $0x10] sm:$0xf]
    %v46 = vld [vmem:[#allocation2 + $0x14] sm:$0xf]
    %v47 = vld [vmem:[#allocation2 + $0x18] sm:$0xf]
    %v48 = vld [vmem:[#allocation2 + $0x1c] sm:$0xf]
    %v49 = vld [vmem:[#allocation2 + $0x20] sm:$0xf]
    %v50 = vld [vmem:[#allocation2 + $0x24] sm:$0xf]
    %v51 = vld [vmem:[#allocation2 + $0x28] sm:$0xf]
    %v52 = vld [vmem:[#allocation2 + $0x2c] sm:$0xf]
    %v53 = vld [vmem:[#allocation2 + $0x30] sm:$0xf]
    %v54 = vld [vmem:[#allocation2 + $0x34] sm:$0xf]
    %v55 = vld [vmem:[#allocation2 + $0x38] sm:$0xf]
    %v56 = vld [vmem:[#allocation2 + $0x3c] sm:$0xf]
    %v57 = vld [vmem:[#allocation5] sm:$0xf]
    %v58 = vld [vmem:[#allocation5 + $0x4] sm:$0xf]
    %v59 = vld [vmem:[#allocation5 + $0x8] sm:$0xf]
    %v60 = vld [vmem:[#allocation5 + $0xc] sm:$0xf]
    %v61 = vld [vmem:[#allocation5 + $0x10] sm:$0xf]
    %v62 = vld [vmem:[#allocation5 + $0x14] sm:$0xf]
    %v63 = vld [vmem:[#allocation5 + $0x18] sm:$0xf]
    %v64 = vld [vmem:[#allocation5 + $0x1c] sm:$0xf]
    %v65 = vld [vmem:[#allocation5 + $0x20] sm:$0xf]
    %v66 = vld [vmem:[#allocation5 + $0x24] sm:$0xf]
    %v67 = vld [vmem:[#allocation5 + $0x28] sm:$0xf]
    %v68 = vld [vmem:[#allocation5 + $0x2c] sm:$0xf]
    %v69 = vld [vmem:[#allocation5 + $0x30] sm:$0xf]
    %v70 = vld [vmem:[#allocation5 + $0x34] sm:$0xf]
    %v71 = vld [vmem:[#allocation5 + $0x38] sm:$0xf]
    %v72 = vld [vmem:[#allocation5 + $0x3c] sm:$0xf]
    %v89 = vunpack.c.l.b16 %v41
    %v90 = vunpack.c.l.b16 %v42
    %v91 = vunpack.c.l.b16 %v43
    %v92 = vunpack.c.l.b16 %v44
    %v93 = vunpack.c.l.b16 %v45
    %v94 = vunpack.c.l.b16 %v46
    %v95 = vunpack.c.l.b16 %v47
    %v96 = vunpack.c.l.b16 %v48
    %v97 = vunpack.c.l.b16 %v49
    %v98 = vunpack.c.l.b16 %v50
    %v99 = vunpack.c.l.b16 %v51
    %v100 = vunpack.c.l.b16 %v52
    %v101 = vunpack.c.l.b16 %v53
    %v102 = vunpack.c.l.b16 %v54
    %v103 = vunpack.c.l.b16 %v55
    %v104 = vunpack.c.l.b16 %v56
    %v105 = vpack.c.b16 %v90, %v89
    %v106 = vpack.c.b16 %v92, %v91
    %v107 = vpack.c.b16 %v94, %v93
    %v108 = vpack.c.b16 %v96, %v95
    %v109 = vpack.c.b16 %v98, %v97
    %v110 = vpack.c.b16 %v100, %v99
    %v111 = vpack.c.b16 %v102, %v101
    %v112 = vpack.c.b16 %v104, %v103
    %v137 = vunpack.c.l.b16 %v57
    %v138 = vunpack.c.l.b16 %v58
    %v139 = vunpack.c.l.b16 %v59
    %v140 = vunpack.c.l.b16 %v60
    %v141 = vunpack.c.l.b16 %v61
    %v142 = vunpack.c.l.b16 %v62
    %v143 = vunpack.c.l.b16 %v63
    %v144 = vunpack.c.l.b16 %v64
    %v145 = vunpack.c.l.b16 %v65
    %v146 = vunpack.c.l.b16 %v66
    %v147 = vunpack.c.l.b16 %v67
    %v148 = vunpack.c.l.b16 %v68
    %v149 = vunpack.c.l.b16 %v69
    %v150 = vunpack.c.l.b16 %v70
    %v151 = vunpack.c.l.b16 %v71
    %v152 = vunpack.c.l.b16 %v72
    %v153 = vpack.c.b16 %v138, %v137
    %v154 = vpack.c.b16 %v140, %v139
    %v155 = vpack.c.b16 %v142, %v141
    %v156 = vpack.c.b16 %v144, %v143
    %v157 = vpack.c.b16 %v146, %v145
    %v158 = vpack.c.b16 %v148, %v147
    %v159 = vpack.c.b16 %v150, %v149
    %v160 = vpack.c.b16 %v152, %v151
    %169 = vmatprep.subr.bf16.mxu0 0
    %170 = vmatpush1.bf16.msra.mxu0 %v160
    %171 = vmatprep.subr.bf16.mxu0 0
    %172 = vmatpush1.bf16.msra.mxu0 %v159
    %173 = vmatprep.subr.bf16.mxu0 0
    %174 = vmatpush1.bf16.msra.mxu0 %v158
    %175 = vmatprep.subr.bf16.mxu0 0
    %176 = vmatpush1.bf16.msra.mxu0 %v157
    %177 = vmatprep.subr.bf16.mxu0 0
    %178 = vmatpush1.bf16.msra.mxu0 %v156
    %179 = vmatprep.subr.bf16.mxu0 0
    %180 = vmatpush1.bf16.msra.mxu0 %v155
    %181 = vmatprep.subr.bf16.mxu0 0
    %182 = vmatpush1.bf16.msra.mxu0 %v154
    %183 = vmatprep.subr.bf16.mxu0 0
    %184 = vmatpush1.bf16.msra.mxu0 %v153
    %185 = vmatprep.subr.bf16.mxu0 0
    %186 = vmatpush2.bf16.msra.mxu0 0
    %187 = vmatprep.subr.bf16.mxu0 0
    %188 = vmatpush2.bf16.msra.mxu0 0
    %189 = vmatprep.subr.bf16.mxu0 0
    %190 = vmatpush2.bf16.msra.mxu0 0
    %191 = vmatprep.subr.bf16.mxu0 0
    %192 = vmatpush2.bf16.msra.mxu0 0
    %193 = vmatprep.subr.bf16.mxu0 0
    %194 = vmatpush2.bf16.msra.mxu0 0
    %195 = vmatprep.subr.bf16.mxu0 0
    %196 = vmatpush2.bf16.msra.mxu0 0
    %197 = vmatprep.subr.bf16.mxu0 0
    %198 = vmatpush2.bf16.msra.mxu0 0
    %199 = vmatprep.subr.bf16.mxu0 0
    %200 = vmatpush2.bf16.msra.mxu0 0
    %201 = vmatprep.mubr.bf16.mxu0 0
    %202 = vmatmul.mubr.bf16.gmra.mxu0 %v105
    %v203 = vpop.f32.mrf.mxu0
    %v204 = vadd.f32 0.0, %v203
    %v205 = vpop.f32.mrf.mxu0
    %v206 = vpop.f32.mrf.mxu0
    %v207 = vadd.f32 0.0, %v206
    %v208 = vpop.f32.mrf.mxu0
    %209 = vmatprep.mubr.bf16.mxu0 0
    %210 = vmatmul.mubr.bf16.gmra.mxu0 %v106
    %v211 = vpop.f32.mrf.mxu0
    %v212 = vadd.f32 0.0, %v211
    %v213 = vpop.f32.mrf.mxu0
    %v214 = vpop.f32.mrf.mxu0
    %v215 = vadd.f32 0.0, %v214
    %v216 = vpop.f32.mrf.mxu0
    %217 = vmatprep.mubr.bf16.mxu0 0
    %218 = vmatmul.mubr.bf16.gmra.mxu0 %v107
    %v219 = vpop.f32.mrf.mxu0
    %v220 = vadd.f32 0.0, %v219
    %v221 = vpop.f32.mrf.mxu0
    %v222 = vpop.f32.mrf.mxu0
    %v223 = vadd.f32 0.0, %v222
    %v224 = vpop.f32.mrf.mxu0
    %225 = vmatprep.mubr.bf16.mxu0 0
    %226 = vmatmul.mubr.bf16.gmra.mxu0 %v108
    %v227 = vpop.f32.mrf.mxu0
    %v228 = vadd.f32 0.0, %v227
    %v229 = vpop.f32.mrf.mxu0
    %v230 = vpop.f32.mrf.mxu0
    %v231 = vadd.f32 0.0, %v230
    %v232 = vpop.f32.mrf.mxu0
    %233 = vmatprep.mubr.bf16.mxu0 0
    %234 = vmatmul.mubr.bf16.gmra.mxu0 %v109
    %v235 = vpop.f32.mrf.mxu0
    %v236 = vadd.f32 0.0, %v235
    %v237 = vpop.f32.mrf.mxu0
    %v238 = vpop.f32.mrf.mxu0
    %v239 = vadd.f32 0.0, %v238
    %v240 = vpop.f32.mrf.mxu0
    %241 = vmatprep.mubr.bf16.mxu0 0
    %242 = vmatmul.mubr.bf16.gmra.mxu0 %v110
    %v243 = vpop.f32.mrf.mxu0
    %v244 = vadd.f32 0.0, %v243
    %v245 = vpop.f32.mrf.mxu0
    %v246 = vpop.f32.mrf.mxu0
    %v247 = vadd.f32 0.0, %v246
    %v248 = vpop.f32.mrf.mxu0
    %249 = vmatprep.mubr.bf16.mxu0 0
    %250 = vmatmul.mubr.bf16.gmra.mxu0 %v111
    %v251 = vpop.f32.mrf.mxu0
    %v252 = vadd.f32 0.0, %v251
    %v253 = vpop.f32.mrf.mxu0
    %v254 = vpop.f32.mrf.mxu0
    %v255 = vadd.f32 0.0, %v254
    %v256 = vpop.f32.mrf.mxu0
    %257 = vmatprep.mubr.bf16.mxu0 0
    %258 = vmatmul.mubr.bf16.gmra.mxu0 %v112
    %v259 = vpop.f32.mrf.mxu0
    %v260 = vadd.f32 0.0, %v259
    %v261 = vpop.f32.mrf.mxu0
    %v262 = vpop.f32.mrf.mxu0
    %v263 = vadd.f32 0.0, %v262
    %v264 = vpop.f32.mrf.mxu0
    %265 = vdwg.mxu0
    %vm266 = vcmp.ge.f32.partialorder %v204, 0.0
    %vm267 = vcmp.ge.f32.partialorder %v207, 0.0
    %vm268 = vcmp.ge.f32.partialorder %v212, 0.0
    %vm269 = vcmp.ge.f32.partialorder %v215, 0.0
    %vm270 = vcmp.ge.f32.partialorder %v220, 0.0
    %vm271 = vcmp.ge.f32.partialorder %v223, 0.0
    %vm272 = vcmp.ge.f32.partialorder %v228, 0.0
    %vm273 = vcmp.ge.f32.partialorder %v231, 0.0
    %vm274 = vcmp.ge.f32.partialorder %v236, 0.0
    %vm275 = vcmp.ge.f32.partialorder %v239, 0.0
    %vm276 = vcmp.ge.f32.partialorder %v244, 0.0
    %vm277 = vcmp.ge.f32.partialorder %v247, 0.0
    %vm278 = vcmp.ge.f32.partialorder %v252, 0.0
    %vm279 = vcmp.ge.f32.partialorder %v255, 0.0
    %vm280 = vcmp.ge.f32.partialorder %v260, 0.0
    %vm281 = vcmp.ge.f32.partialorder %v263, 0.0
    %v282 = vmul.f32 %v204, 0.2
    %v283 = vmul.f32 %v207, 0.2
    %v284 = vmul.f32 %v212, 0.2
    %v285 = vmul.f32 %v215, 0.2
    %v286 = vmul.f32 %v220, 0.2
    %v287 = vmul.f32 %v223, 0.2
    %v288 = vmul.f32 %v228, 0.2
    %v289 = vmul.f32 %v231, 0.2
    %v290 = vmul.f32 %v236, 0.2
    %v291 = vmul.f32 %v239, 0.2
    %v292 = vmul.f32 %v244, 0.2
    %v293 = vmul.f32 %v247, 0.2
    %v294 = vmul.f32 %v252, 0.2
    %v295 = vmul.f32 %v255, 0.2
    %v296 = vmul.f32 %v260, 0.2
    %v297 = vmul.f32 %v263, 0.2
    %v298 = vsel %vm266, %v204, %v282
    %v299 = vsel %vm267, %v207, %v283
    %v300 = vsel %vm268, %v212, %v284
    %v301 = vsel %vm269, %v215, %v285
    %v302 = vsel %vm270, %v220, %v286
    %v303 = vsel %vm271, %v223, %v287
    %v304 = vsel %vm272, %v228, %v288
    %v305 = vsel %vm273, %v231, %v289
    %v306 = vsel %vm274, %v236, %v290
    %v307 = vsel %vm275, %v239, %v291
    %v308 = vsel %vm276, %v244, %v292
    %v309 = vsel %vm277, %v247, %v293
    %v310 = vsel %vm278, %v252, %v294
    %v311 = vsel %vm279, %v255, %v295
    %v312 = vsel %vm280, %v260, %v296
    %v313 = vsel %vm281, %v263, %v297
    %v314 = vpack.c.bf16 %v299, %v298
    %v315 = vpack.c.bf16 %v301, %v300
    %v316 = vpack.c.bf16 %v303, %v302
    %v317 = vpack.c.bf16 %v305, %v304
    %v318 = vpack.c.bf16 %v307, %v306
    %v319 = vpack.c.bf16 %v309, %v308
    %v320 = vpack.c.bf16 %v311, %v310
    %v321 = vpack.c.bf16 %v313, %v312
    %v330 = vunpack.c.l.b16 %v314
    %v331 = vunpack.c.h.b16 %v314
    %v332 = vunpack.c.l.b16 %v315
    %v333 = vunpack.c.h.b16 %v315
    %v334 = vunpack.c.l.b16 %v316
    %v335 = vunpack.c.h.b16 %v316
    %v336 = vunpack.c.l.b16 %v317
    %v337 = vunpack.c.h.b16 %v317
    %v338 = vunpack.c.l.b16 %v318
    %v339 = vunpack.c.h.b16 %v318
    %v340 = vunpack.c.l.b16 %v319
    %v341 = vunpack.c.h.b16 %v319
    %v342 = vunpack.c.l.b16 %v320
    %v343 = vunpack.c.h.b16 %v320
    %v344 = vunpack.c.l.b16 %v321
    %v345 = vunpack.c.h.b16 %v321
    %v346 = vpack.c.b16 %v330, %v330
    %v347 = vpack.c.b16 %v331, %v331
    %v348 = vpack.c.b16 %v332, %v332
    %v349 = vpack.c.b16 %v333, %v333
    %v350 = vpack.c.b16 %v334, %v334
    %v351 = vpack.c.b16 %v335, %v335
    %v352 = vpack.c.b16 %v336, %v336
    %v353 = vpack.c.b16 %v337, %v337
    %v354 = vpack.c.b16 %v338, %v338
    %v355 = vpack.c.b16 %v339, %v339
    %v356 = vpack.c.b16 %v340, %v340
    %v357 = vpack.c.b16 %v341, %v341
    %v358 = vpack.c.b16 %v342, %v342
    %v359 = vpack.c.b16 %v343, %v343
    %v360 = vpack.c.b16 %v344, %v344
    %v361 = vpack.c.b16 %v345, %v345
    %378 = vst [vmem:[#allocation7] sm:$0xf] %v346
    %379 = vst [vmem:[#allocation7 + $0x4] sm:$0xf] %v347
    %380 = vst [vmem:[#allocation7 + $0x8] sm:$0xf] %v348
    %381 = vst [vmem:[#allocation7 + $0xc] sm:$0xf] %v349
    %382 = vst [vmem:[#allocation7 + $0x10] sm:$0xf] %v350
    %383 = vst [vmem:[#allocation7 + $0x14] sm:$0xf] %v351
    %384 = vst [vmem:[#allocation7 + $0x18] sm:$0xf] %v352
    %385 = vst [vmem:[#allocation7 + $0x1c] sm:$0xf] %v353
    %386 = vst [vmem:[#allocation7 + $0x20] sm:$0xf] %v354
    %387 = vst [vmem:[#allocation7 + $0x24] sm:$0xf] %v355
    %388 = vst [vmem:[#allocation7 + $0x28] sm:$0xf] %v356
    %389 = vst [vmem:[#allocation7 + $0x2c] sm:$0xf] %v357
    %390 = vst [vmem:[#allocation7 + $0x30] sm:$0xf] %v358
    %391 = vst [vmem:[#allocation7 + $0x34] sm:$0xf] %v359
    %392 = vst [vmem:[#allocation7 + $0x38] sm:$0xf] %v360
    %393 = vst [vmem:[#allocation7 + $0x3c] sm:$0xf] %v361
    // Predicated region
    $region18: #{tpu_custom_call.1} parent=1 // pred_check
      _
    $region19: #{tpu_custom_call.1} parent=1 // pred_check_branch
      %395 = sbr.rel (0) target = $region21
    $region20: #{tpu_custom_call.1} parent=1 // pred_region
      %s397 = ssub.s32 1024, 1024
      %398 = vsyncadd [#allocation4], %s397
      %s399 = sshll.u32 [#allocation7], 4
      %s400 = int_to_ptr.vmem [resolvable:$true] %s399
      %405 = dma.vmem_to_hbm [thread:$0]  %s400, 1024, %s2, [#allocation4], 64, 64, 4
    $region21: #{tpu_custom_call.1} parent=1 // pred_fallthru
      _
    // Predicated region
    $region22: #{tpu_custom_call.1} parent=1 // pred_check
      _
    $region23: #{tpu_custom_call.1} parent=1 // pred_check_branch
      %407 = sbr.rel (0) target = $region25
    $region24: #{tpu_custom_call.1} parent=1 // pred_region
      %408 = dma.done [#allocation4], 1024
    $region25: #{tpu_custom_call.1} parent=1 // pred_fallthru
      _
    %409 = vsyncpa [#allocation3], 1
    %410 = vsyncpa [#allocation6], 1
    %411 = vsyncpa [#allocation4], 1

</llo_original>
